<compile_context>
chip_gen: v5e
topology: v5e:2x2
jax: 0.10.0
libtpu: 0.0.40
codegen_flags: <defaults>
</compile_context>

<pallas_src>
import functools
from dataclasses import dataclass, field
from typing import Dict, List, Optional

import jax
import jax.numpy as jnp
from jax.experimental import pallas as pl
from jax.experimental.pallas import tpu as pltpu

LANE = 128
SUBLANE = 8
_DEFAULT_CHUNK = 256  # indices processed per grid step


def _round_up(x: int, m: int) -> int:
    return ((x + m - 1) // m) * m


# ----------------------------- Pallas kernel --------------------------------

def _bag_pool_kernel(idx_ref, bag_ref, table_ref, out_ref, *, chunk: int):
    """Sum-pool gathered table rows into bags.

    idx_ref:   (Np,) int32 SMEM (scalar prefetch) -- row index into table per item.
    bag_ref:   (Np,) int32 SMEM (scalar prefetch) -- destination bag per item;
               padding items point at the dummy sink row (== num_bags).
    table_ref: (Vp, Dp) VMEM -- whole (stacked) embedding table, resident across
               the grid (constant index_map => fetched once).
    out_ref:   (rows_out, Dp) f32 VMEM -- resident accumulator holding every bag.
    """
    c = pl.program_id(0)

    @pl.when(c == 0)
    def _init():
        out_ref[...] = jnp.zeros_like(out_ref)

    base = c * chunk

    # Row-wise accumulation: each item moves exactly one (1, Dp) row
    # (VMEM gather -> add -> store); no 8xDp broadcast/select work.
    @pl.loop(0, chunk)
    def _item(j):
        p = base + j
        idx = idx_ref[p]
        bag = bag_ref[p]
        row = table_ref[pl.ds(idx, 1), :].astype(jnp.float32)
        out_ref[pl.ds(bag, 1), :] = out_ref[pl.ds(bag, 1), :] + row


def fused_bag_sum(table_padded: jax.Array, indices: jax.Array,
                  bag_ids: jax.Array, num_bags: int) -> jax.Array:
    """Sum-pool table_padded[indices] rows into bags given by bag_ids.

    table_padded: (Vp, Dp) with Dp a multiple of 128, Vp a multiple of 8.
    indices:      (N,) int32 row indices into table_padded.
    bag_ids:      (N,) int32 bag id per index in [0, num_bags) (any order).
    returns:      (num_bags, Dp) f32 bag sums; untouched bags are exactly zero.
    """
    n = int(indices.shape[0])
    vp, dp = int(table_padded.shape[0]), int(table_padded.shape[1])
    rows_out = _round_up(num_bags + 1, SUBLANE)  # +1 dummy sink row for padding items
    chunk = int(min(_DEFAULT_CHUNK, _round_up(max(n, 1), SUBLANE)))
    num_chunks = max(pl.cdiv(n, chunk), 1)
    n_pad = num_chunks * chunk
    dummy_bag = num_bags  # < rows_out, sliced away below

    idx_p = jnp.zeros((n_pad,), jnp.int32)
    bag_p = jnp.full((n_pad,), dummy_bag, jnp.int32)
    if n > 0:
        idx_p = idx_p.at[:n].set(indices.astype(jnp.int32))
        bag_p = bag_p.at[:n].set(bag_ids.astype(jnp.int32))

    table_bytes = vp * dp * jnp.dtype(table_padded.dtype).itemsize
    out_bytes = rows_out * dp * 4
    try:  # VMEM residency budget; conservative on v7x (64 MiB physical VMEM).
        vmem_cap = int(pltpu.get_tpu_info().vmem_capacity_bytes)
    except Exception:
        vmem_cap = 64 << 20
    budget = int(vmem_cap * 0.6)
    if table_bytes + 2 * out_bytes > budget:
        # TODO(synk): HBM row-gather fallback for tables too large for VMEM residency.
        raise ValueError("Embedding table too large for the VMEM-resident gather path")
    vmem_limit = int(min(max(2 * (table_bytes + out_bytes) + (4 << 20), 32 << 20),
                         budget + (8 << 20)))

    kernel = functools.partial(_bag_pool_kernel, chunk=chunk)
    out = pl.pallas_call(
        kernel,
        out_shape=jax.ShapeDtypeStruct((rows_out, dp), jnp.float32),
        grid_spec=pltpu.PrefetchScalarGridSpec(
            num_scalar_prefetch=2,
            grid=(num_chunks,),
            in_specs=[
                # Whole padded table: constant block index => DMA'd once, resident.
                pl.BlockSpec((vp, dp), lambda c, idx, bag: (0, 0)),
            ],
            # Whole pooled output resident across the grid (accumulator pattern).
            out_specs=pl.BlockSpec((rows_out, dp), lambda c, idx, bag: (0, 0)),
        ),
        compiler_params=pltpu.CompilerParams(
            dimension_semantics=("arbitrary",),
            vmem_limit_bytes=vmem_limit,
        ),
    )(idx_p, bag_p, table_padded)
    return out[:num_bags]


# --------------------- EmbeddingBagCollection (JAX) --------------------------

@dataclass
class EmbeddingBagConfig:
    name: str
    embedding_dim: int
    num_embeddings: int
    feature_names: List[str] = field(default_factory=list)
    pooling: str = "sum"   # torchrec default PoolingType.SUM; "mean" also supported


def get_embedding_names_by_table(tables: List[EmbeddingBagConfig]) -> List[List[str]]:
    shared_feature: Dict[str, bool] = {}
    for cfg in tables:
        for feature_name in cfg.feature_names:
            if feature_name not in shared_feature:
                shared_feature[feature_name] = False
            else:
                shared_feature[feature_name] = True
    names_by_table: List[List[str]] = []
    for cfg in tables:
        names = []
        for feature_name in cfg.feature_names:
            if shared_feature[feature_name]:
                names.append(feature_name + "@" + cfg.name)
            else:
                names.append(feature_name)
        names_by_table.append(names)
    return names_by_table


class EmbeddingBagCollection:
    """JAX/Pallas re-implementation of torchrec EmbeddingBagCollection forward."""

    def __init__(self, tables: List[EmbeddingBagConfig], is_weighted: bool = False,
                 key: Optional[jax.Array] = None,
                 table_dtype=jnp.float32) -> None:
        if key is None:
            key = jax.random.PRNGKey(0)
        self._is_weighted = is_weighted
        self._embedding_bag_configs = tables
        self._lengths_per_embedding: List[int] = []
        self.embedding_bags: Dict[str, jax.Array] = {}

        # Tables grouped by padded (lane-dense) embedding width, stacked vertically
        # into one super-table per group -> one pallas_call per group.
        self._dp_groups: Dict[int, List[int]] = {}     # dp -> table indices
        self._row_offsets: Dict[str, int] = {}         # table name -> row offset
        self._stacked_tables: Dict[int, jax.Array] = {}
        parts: Dict[int, List[jax.Array]] = {}

        table_names = set()
        for i, cfg in enumerate(tables):
            if cfg.name in table_names:
                raise ValueError(f"Duplicate table name {cfg.name}")
            table_names.add(cfg.name)
            if not cfg.feature_names:
                cfg.feature_names = [cfg.name]
            # Deterministic init (stands in for nn.EmbeddingBag's N(0,1) init_fn).
            tkey = jax.random.fold_in(key, i)
            w = jax.random.normal(
                tkey, (cfg.num_embeddings, cfg.embedding_dim), jnp.float32
            )
            self.embedding_bags[cfg.name] = w
            vp = _round_up(cfg.num_embeddings, SUBLANE)
            dp = _round_up(cfg.embedding_dim, LANE)
            padded = (
                jnp.zeros((vp, dp), table_dtype)
                .at[: cfg.num_embeddings, : cfg.embedding_dim]
                .set(w.astype(table_dtype))
            )
            if dp not in parts:
                parts[dp] = []
                self._dp_groups[dp] = []
            self._row_offsets[cfg.name] = sum(int(p.shape[0]) for p in parts[dp])
            parts[dp].append(padded)
            self._dp_groups[dp].append(i)
            self._lengths_per_embedding.extend(
                len(cfg.feature_names) * [cfg.embedding_dim]
            )
        for dp, plist in parts.items():
            self._stacked_tables[dp] = jnp.concatenate(plist, axis=0)

        self._embedding_names = [
            n for ns in get_embedding_names_by_table(tables) for n in ns
        ]
        self._feature_names = [t.feature_names for t in tables]

    def is_weighted(self) -> bool:
        return self._is_weighted

    def embedding_bag_configs(self) -> List[EmbeddingBagConfig]:
        return self._embedding_bag_configs

    def forward(self, features: Dict[str, Dict[str, jax.Array]]) -> Dict[str, object]:
        """features: feature_name -> {"values": (EB_f,) i32, "lengths": (B,) i32}."""
        results: Dict[tuple, jax.Array] = {}

        for dp, table_ids in self._dp_groups.items():
            idx_list, bag_list, slices = [], [], []
            bag_base = 0
            for ti in table_ids:
                cfg = self._embedding_bag_configs[ti]
                row_off = self._row_offsets[cfg.name]
                for fi, fname in enumerate(cfg.feature_names):
                    f = features[fname]
                    vals = f["values"].astype(jnp.int32)
                    lens = f["lengths"].astype(jnp.int32)
                    b = int(lens.shape[0])
                    n_f = int(vals.shape[0])
                    if int(jnp.sum(lens)) != n_f:
                        raise ValueError(
                            f"sum(lengths) != len(values) for feature {fname}")
                    seg = jnp.repeat(jnp.arange(b, dtype=jnp.int32), lens,
                                     total_repeat_length=n_f)
                    idx_list.append(vals + jnp.int32(row_off))
                    bag_list.append(seg + jnp.int32(bag_base))
                    slices.append((ti, fi, bag_base, b, lens,
                                   cfg.pooling.lower(), cfg.embedding_dim))
                    bag_base += b
            indices = jnp.concatenate(idx_list)
            bag_ids = jnp.concatenate(bag_list)

            sums = fused_bag_sum(self._stacked_tables[dp], indices, bag_ids, bag_base)

            for (ti, fi, bag_start, b, lens, pooling, d) in slices:
                s = sums[bag_start:bag_start + b, :d]
                if pooling == "mean":
                    s = s / jnp.maximum(lens, 1)[:, None].astype(jnp.float32)
                elif pooling != "sum":
                    raise ValueError(f"Unsupported pooling {pooling}")
                s = jnp.where(lens[:, None] > 0, s, 0.0)   # empty bags -> 0
                results[(ti, fi)] = s.astype(jnp.float32)

        pooled_embeddings: List[jax.Array] = []
        for ti, cfg in enumerate(self._embedding_bag_configs):
            for fi in range(len(cfg.feature_names)):
                pooled_embeddings.append(results[(ti, fi)])

        values = jnp.concatenate(pooled_embeddings, axis=1)   # (B, sum_D)
        offsets = [0]
        for l in self._lengths_per_embedding:
            offsets.append(offsets[-1] + l)
        return {
            "keys": list(self._embedding_names),
            "values": values,
            "length_per_key": list(self._lengths_per_embedding),
            "offset_per_key": offsets,
        }


# --------------------------------- main --------------------------------------

if __name__ == "__main__":
    key = jax.random.PRNGKey(0)
    B = 5

    t1 = EmbeddingBagConfig(name="t1", embedding_dim=12, num_embeddings=10,
                            feature_names=["f1"], pooling="sum")
    t2 = EmbeddingBagConfig(name="t2", embedding_dim=20, num_embeddings=17,
                            feature_names=["f2", "f3"], pooling="mean")
    ebc = EmbeddingBagCollection(tables=[t1, t2], key=key)

    # KeyedJaggedTensor-equivalent sparse input (jagged bags per batch element).
    features = {
        "f1": {"values": jnp.array([0, 1, 2, 3, 4, 5], jnp.int32),
               "lengths": jnp.array([2, 0, 1, 3, 0], jnp.int32)},
        "f2": {"values": jnp.array([3, 4, 5, 6, 7, 8, 9], jnp.int32),
               "lengths": jnp.array([1, 1, 3, 0, 2], jnp.int32)},
        "f3": {"values": jnp.array([1, 16, 0, 3, 2, 5, 7, 9], jnp.int32),
               "lengths": jnp.array([1, 2, 1, 4, 0], jnp.int32)},
    }

    out = ebc.forward(features)
    jax.block_until_ready(out["values"])

    # ----------------------- pure-JAX reference check ------------------------
    def ref_pooled(weight, vals, lens, pooling):
        b = int(lens.shape[0])
        seg = jnp.repeat(jnp.arange(b), lens, total_repeat_length=int(vals.shape[0]))
        gathered = jnp.take(weight, vals, axis=0)
        pooled = jnp.zeros((b, weight.shape[1]), jnp.float32).at[seg].add(gathered)
        if pooling == "mean":
            pooled = pooled / jnp.maximum(lens, 1)[:, None].astype(jnp.float32)
        return jnp.where(lens[:, None] > 0, pooled, 0.0)

    ref_parts = []
    for cfg in ebc.embedding_bag_configs():
        w = ebc.embedding_bags[cfg.name]
        for fname in cfg.feature_names:
            f = features[fname]
            ref_parts.append(ref_pooled(w, f["values"], f["lengths"], cfg.pooling))
    ref_values = jnp.concatenate(ref_parts, axis=1)

    ok = True
    total_d = sum(out["length_per_key"])
    if out["values"].shape != (B, total_d) or out["values"].dtype != jnp.float32:
        ok = False
    if out["keys"] != ["f1", "f2", "f3"]:
        ok = False
    if out["length_per_key"] != [12, 20, 20] or out["offset_per_key"] != [0, 12, 32, 52]:
        ok = False
    if not jnp.allclose(out["values"], ref_values, atol=1e-5, rtol=1e-5):
        ok = False

    print("KERNEL_OK" if ok else "KERNEL_MISMATCH")
</pallas_src>

<mosaic_0001>
module attributes {stable_mosaic.version = 11 : i64} {
  func.func @_bag_pool_kernel(%arg0: i32, %arg1: memref<24xi32, #tpu.memory_space<smem>>, %arg2: memref<24xi32, #tpu.memory_space<smem>>, %arg3: memref<40x128xf32, #tpu.memory_space<vmem>>, %arg4: memref<16x128xf32, #tpu.memory_space<vmem>>) attributes {dimension_semantics = [#tpu.dimension_semantics<arbitrary>], iteration_bounds = array<i64: 1>, scalar_prefetch = 2 : i64, scratch_operands = 0 : i64, tpu.core_type = #tpu.core_type<tc>, window_params = [{pipeline_mode = #tpu.pipeline_mode<synchronous>, transform_indices = @transform_0, window_bounds = array<i64: 40, 128>}, {pipeline_mode = #tpu.pipeline_mode<synchronous>, transform_indices = @transform_1, window_bounds = array<i64: 16, 128>}]} {
    %c0_i32 = arith.constant 0 : i32
    %0 = arith.cmpi eq, %arg0, %c0_i32 : i32
    %1 = arith.extui %0 : i1 to i32
    %c0_i32_0 = arith.constant 0 : i32
    %2 = arith.cmpi ne, %1, %c0_i32_0 : i32
    scf.if %2 {
      %cst = arith.constant 0.000000e+00 : f32
      %5 = vector.broadcast %cst : f32 to vector<16x128xf32>
      %c0 = arith.constant 0 : index
      %c0_4 = arith.constant 0 : index
      %6 = vector.load %arg4[%c0, %c0_4] : memref<16x128xf32, #tpu.memory_space<vmem>>, vector<16x128xf32>
      tpu.vector_store %arg4[%c0, %c0_4], %5 {strides = array<i32>} : memref<16x128xf32, #tpu.memory_space<vmem>>, vector<16x128xf32>,
    } else {
    }
    %c24_i32 = arith.constant 24 : i32
    %3 = arith.muli %arg0, %c24_i32 : i32
    %c0_i32_1 = arith.constant 0 : i32
    %c24_i32_2 = arith.constant 24 : i32
    %4 = arith.addi %c0_i32_1, %c24_i32_2 : i32
    %c1_i32 = arith.constant 1 : i32
    scf.for %arg5 = %c0_i32_1 to %4 step %c1_i32  : i32 {
      %c1_i32_4 = arith.constant 1 : i32
      %5 = arith.muli %arg5, %c1_i32_4 : i32
      %c0_i32_5 = arith.constant 0 : i32
      %6 = arith.addi %c0_i32_5, %5 : i32
      %7 = arith.addi %3, %6 : i32
      %8 = arith.index_cast %7 : i32 to index
      %9 = memref.load %arg1[%8] : memref<24xi32, #tpu.memory_space<smem>>
      %10 = arith.index_cast %7 : i32 to index
      %11 = memref.load %arg2[%10] : memref<24xi32, #tpu.memory_space<smem>>
      %12 = arith.index_cast %9 : i32 to index
      %c0 = arith.constant 0 : index
      %13 = vector.load %arg3[%12, %c0] : memref<40x128xf32, #tpu.memory_space<vmem>>, vector<1x128xf32>
      %14 = arith.index_cast %11 : i32 to index
      %c0_6 = arith.constant 0 : index
      %15 = vector.load %arg4[%14, %c0_6] : memref<16x128xf32, #tpu.memory_space<vmem>>, vector<1x128xf32>
      %16 = arith.addf %15, %13 : vector<1x128xf32>
      %17 = arith.index_cast %11 : i32 to index
      %c0_7 = arith.constant 0 : index
      %18 = vector.load %arg4[%17, %c0_7] : memref<16x128xf32, #tpu.memory_space<vmem>>, vector<1x128xf32>
      tpu.vector_store %arg4[%17, %c0_7], %16 {strides = array<i32>} : memref<16x128xf32, #tpu.memory_space<vmem>>, vector<1x128xf32>,
    }
    %c24_i32_3 = arith.constant 24 : i32
    return
  }
  func.func @transform_0(%arg0: i32, %arg1: memref<24xi32, #tpu.memory_space<smem>>, %arg2: memref<24xi32, #tpu.memory_space<smem>>) -> (i32, i32) {
    %c0_i32 = arith.constant 0 : i32
    %c0_i32_0 = arith.constant 0 : i32
    %c0_i32_1 = arith.constant 0 : i32
    return %c0_i32, %c0_i32_0 : i32, i32
  }
  func.func @transform_1(%arg0: i32, %arg1: memref<24xi32, #tpu.memory_space<smem>>, %arg2: memref<24xi32, #tpu.memory_space<smem>>) -> (i32, i32) {
    %c0_i32 = arith.constant 0 : i32
    %c0_i32_0 = arith.constant 0 : i32
    %c0_i32_1 = arith.constant 0 : i32
    return %c0_i32, %c0_i32_0 : i32, i32
  }
}

</mosaic_0001>

<llo_original>
// kernel: tpu_custom_call.1
$region0: #{tpu_custom_call.1}
  #allocation0 [shape = 'u32[]', space=smem, size = 0x4, offset = 0x4, fixed_abs, tag = 'smem constant byte address 0x4 - core index']
  #allocation1 [shape = 'u32[72,128]{1,0:T(1,128)}', space=vmem, size = 0x9000, scoped, tag = 'internal scratch']
  #allocation2 [shape = 's32[1]{0}', space=sflag, size = 0x4, scoped, tag = 'scoped memory for tpu_custom_call.1']
  #allocation3 [shape = 'u8[512]{0}', space=smem, size = 0x200, scoped, tag = 'prefetched SMEM operand 0']
  #allocation4 [shape = 'u8[512]{0}', space=smem, size = 0x200, scoped, tag = 'prefetched SMEM operand 1']
  %s0 = inlined_call_operand.hbm [shape: s32[24], index: 0, kind: input, shape index: {}]
  %s1 = inlined_call_operand.hbm [shape: s32[24], index: 1, kind: input, shape index: {}]
  %s2 = inlined_call_operand.hbm [shape: f32[40,128], index: 2, kind: input, shape index: {}]
  %s3 = inlined_call_operand.hbm [shape: f32[16,128], index: 3, kind: output, shape index: {}]
  %s4 = sld [smem:[#allocation0]]
  $region29: #{tpu_custom_call.1} parent=0
    _
  %s6 = ssub.s32 1, %s4
  %s7 = scalar_select 0, %s6, %s4
  %s9 = sshll.u32 %s0, 4
  %s10 = int_to_ptr.hbm [resolvable:$true] %s9
  %12 = dma.hbm_to_smem %s10, 16, [#allocation3], [#allocation2]
  %s14 = sshll.u32 %s1, 4
  %s15 = int_to_ptr.hbm [resolvable:$true] %s14
  %17 = dma.hbm_to_smem %s15, 16, [#allocation4], [#allocation2]
  %19 = dma.done [#allocation2], 32
  %20 = sfence
  $region1: #{tpu_custom_call.1} parent=0
    #allocation5 [shape = 'u8[20480]{0}', space=vmem, size = 0x5000, scoped, tag = 'input window, operand 2, single buffered']
    #allocation6 [shape = 's32[1]{0}', space=sflag, size = 0x4, scoped, tag = 'scoped memory for tpu_custom_call.1']
    #allocation7 [shape = 's32[1]{0}', space=sflag, size = 0x4, scoped, tag = 'scoped memory for tpu_custom_call.1']
    #allocation8 [shape = 'u8[8192]{0}', space=vmem, size = 0x2000, scoped, tag = 'output window, operand 0, single buffered']
    %21 = vsyncpa [#allocation6], 0
    %22 = vsyncpa [#allocation7], 0
    // Predicated region
    $region2: #{tpu_custom_call.1} parent=1 // pred_check
      _
    $region3: #{tpu_custom_call.1} parent=1 // pred_check_branch
      %24 = sbr.rel (0) target = $region5
    $region4: #{tpu_custom_call.1} parent=1 // pred_region
      %26 = vsyncadd [#allocation6], 0
      %s27 = sshll.u32 %s2, 4
      %s28 = int_to_ptr.hbm [resolvable:$true] %s27
      %s29 = sshll.u32 [#allocation5], 4
      %s30 = int_to_ptr.vmem [resolvable:$true] %s29
      %35 = dma.hbm_to_vmem [thread:$0]  %s28, 640, %s30, [#allocation6], 128, 128, 8
    $region5: #{tpu_custom_call.1} parent=1 // pred_fallthru
      _
    // Predicated region
    $region6: #{tpu_custom_call.1} parent=1 // pred_check
      _
    $region7: #{tpu_custom_call.1} parent=1 // pred_check_branch
      %37 = sbr.rel (0) target = $region9
    $region8: #{tpu_custom_call.1} parent=1 // pred_region
      %39 = dma.done [#allocation6], 640
    $region9: #{tpu_custom_call.1} parent=1 // pred_fallthru
      _
    %p40 = scmp.eq.s32.totalorder 0, 0
    // Predicated region
    $region10: #{tpu_custom_call.1} parent=1 // pred_check
      %p41 = pneg %p40
    $region11: #{tpu_custom_call.1} parent=1 // pred_check_branch
      %43 = sbr.rel (%p41) target = $region13
    $region12: #{tpu_custom_call.1} parent=1 // pred_region
      %44 = vst [vmem:[#allocation8] sm:$0xff] 0.0
      %45 = vst [vmem:[#allocation8 + $0x8] sm:$0xff] 0.0
    $region13: #{tpu_custom_call.1} parent=1 // pred_fallthru
      _
    %s46 = smul.u32 0, 24
    loop: start=0, step=1, limit=24
    $region14: #{tpu_custom_call.1} parent=1 // loop_pre_header
      _
    $region15: #{tpu_custom_call.1} parent=1 // loop_header
      %s48 = sphi 0, %s52
      %p49 = scmp.ge.s32.totalorder %s48, 24
    $region16: #{tpu_custom_call.1} parent=1 // loop_header_branch
      %51 = sbr.rel (%p49) target = $region20
    $region17: #{tpu_custom_call.1} parent=1 // loop_body
      %s53 = sadd.s32 %s46, %s48
      %s54 = sld [smem:[#allocation3 + %s53]]
      %s55 = sld [smem:[#allocation4 + %s53]]
      %s56 = scalar_lea.vmem [#allocation5], %s54
      %v57 = vld [vmem:[%s56] sm:$0x1]
      %s58 = scalar_lea.vmem [#allocation8], %s55
      %v59 = vld [vmem:[%s58] sm:$0x1]
      %v60 = vadd.f32 %v59, %v57
      %61 = vst [vmem:[%s58] sm:$0x1] %v60
    $region18: #{tpu_custom_call.1} parent=1 // loop_footer
      %s52 = sadd.s32 1, %s48
    $region19: #{tpu_custom_call.1} parent=1 // loop_footer_branch
      %47 = sbr.rel target = $region15
    $region20: #{tpu_custom_call.1} parent=1 // loop_exit
      _
    // Predicated region
    $region21: #{tpu_custom_call.1} parent=1 // pred_check
      _
    $region22: #{tpu_custom_call.1} parent=1 // pred_check_branch
      %63 = sbr.rel (0) target = $region24
    $region23: #{tpu_custom_call.1} parent=1 // pred_region
      %65 = vsyncadd [#allocation7], 0
      %s66 = sshll.u32 [#allocation8], 4
      %s67 = int_to_ptr.vmem [resolvable:$true] %s66
      %s68 = sshll.u32 %s3, 4
      %s69 = int_to_ptr.hbm [resolvable:$true] %s68
      %74 = dma.vmem_to_hbm [thread:$0]  %s67, 256, %s69, [#allocation7], 128, 128, 8
    $region24: #{tpu_custom_call.1} parent=1 // pred_fallthru
      _
    // Predicated region
    $region25: #{tpu_custom_call.1} parent=1 // pred_check
      _
    $region26: #{tpu_custom_call.1} parent=1 // pred_check_branch
      %76 = sbr.rel (0) target = $region28
    $region27: #{tpu_custom_call.1} parent=1 // pred_region
      %78 = dma.done [#allocation7], 256
    $region28: #{tpu_custom_call.1} parent=1 // pred_fallthru
      _
    %79 = vsyncpa [#allocation6], 1
    %80 = vsyncpa [#allocation7], 1

</llo_original>
